<compile_context>
chip_gen: v6e
topology: v6e:2x2x1
jax: 0.10.0
libtpu: 0.0.40
codegen_flags: <defaults>
</compile_context>

<pallas_src>
import functools

import jax
import jax.numpy as jnp
from jax.experimental import pallas as pl
from jax.experimental.pallas import tpu as pltpu


def _round_up(x, m):
    return ((x + m - 1) // m) * m


@functools.lru_cache(maxsize=1)
def _vmem_budget_bytes():
    """Usable VMEM budget for one kernel (generation-aware, cached)."""
    cap = 64 * 1024 * 1024  # conservative fallback = v7x per-TensorCore VMEM
    try:
        info = pltpu.get_tpu_info()
        for name in ("vmem_capacity_bytes", "vmem_size_bytes", "vmem_bytes"):
            v = getattr(info, name, None)
            if v:
                cap = int(v)
                break
    except Exception:
        pass
    return int(cap * 0.8)


# ----------------------------------------------------------------------------
# Kernel
# ----------------------------------------------------------------------------
def _disc_fused_kernel(xt_ref, w1t_ref, w2t_ref, aux_ref, btf_ref, out_ref, *,
                       tf_on_mxu):
    """One (modality, batch-tile) grid step.  Batch lives on the lane axis.

      xt_ref  : (D_pad, bb)        transposed, zero-padded activation tile
      w1t_ref : (H_pad, D_pad)     W1^T (zero-padded)
      w2t_ref : (H_pad, H_pad)     W2^T (zero-padded)
      aux_ref : (H_pad, 3)  f32    [b1 | b2 | wtf] merged bias-like block
      btf_ref : (G,)        f32    TF scalar biases, resident in SMEM
      out_ref : (1, bb)            lane-dense per-row TF score
    """
    m = pl.program_id(0)
    w_dtype = w1t_ref.dtype

    aux = aux_ref[...]                         # one load, three static slices
    b1, b2, wtf = aux[:, 0:1], aux[:, 1:2], aux[:, 2:3]

    # Layer 1: h1 = relu(W1 x + b1)  -> (H_pad, bb).  MXU matmul, f32 accum.
    h1 = jnp.dot(w1t_ref[...], xt_ref[...], preferred_element_type=jnp.float32)
    h1 = jnp.maximum(h1 + b1, 0.0)             # bias/ReLU stay f32 (v5e VPU)

    # Layer 2: h2 = relu(W2 h1 + b2) -> (H_pad, bb).
    h2 = jnp.dot(w2t_ref[...], h1.astype(w_dtype),
                 preferred_element_type=jnp.float32)
    h2 = jnp.maximum(h2 + b2, 0.0)

    # TF head Linear(dim_hid, 1): unit chosen per regime at trace time.
    if tf_on_mxu:
        # very wide hidden: let the (idle-ish) MXU do the M=1 contraction
        tf = jax.lax.dot_general(wtf, h2, (((0,), (0,)), ((), ())),
                                 preferred_element_type=jnp.float32)
    else:
        # VPU multiply + sublane reduction; result already lane-dense (1, bb)
        tf = jnp.sum(h2 * wtf, axis=0, keepdims=True)

    out_ref[...] = (tf + btf_ref[m]).astype(out_ref.dtype)


# ----------------------------------------------------------------------------
# Fused forward for one (dim_in bucket, batch) group -- everything inside jit
# ----------------------------------------------------------------------------
@functools.partial(
    jax.jit,
    static_argnames=("bb", "take_weights", "tf_on_mxu",
                     "single_buffer_weights", "vmem_limit_bytes"))
def _forward_group_jit(w1t, w2t, aux, btf, xs, sel, *, bb, take_weights,
                       tf_on_mxu, single_buffer_weights, vmem_limit_bytes):
    # Optional modality selection (only when a strict subset of a bucket is
    # present).  The common all-present case passes the packed arrays through
    # untouched -> no HBM weight copies per forward().
    if take_weights:
        w1t = jnp.take(w1t, sel, axis=0)
        w2t = jnp.take(w2t, sel, axis=0)
        aux = jnp.take(aux, sel, axis=0)
        btf = jnp.take(btf, sel, axis=0)

    g, hpad, dpad = w1t.shape
    x_dtype = w1t.dtype
    batch = xs[0].shape[0]
    batch_pad = _round_up(batch, bb)
    nb = batch_pad // bb

    # Transposed, zero-padded activation stack (batch on the lane axis),
    # built inside the same jit as the kernel call.
    xts = []
    for x in xs:
        d = x.shape[1]
        xt = jnp.zeros((dpad, batch_pad), x_dtype)
        xt = xt.at[:d, :batch].set(x.T.astype(x_dtype))
        xts.append(xt)
    xt = jnp.stack(xts, axis=0)                # (g, dpad, batch_pad)

    # Weights only change once per modality (outer grid axis); single-buffer
    # them when double-buffering would eat more than half the VMEM budget.
    wkw = {"pipeline_mode": pl.Buffered(1)} if single_buffer_weights else {}
    kernel = functools.partial(_disc_fused_kernel, tf_on_mxu=tf_on_mxu)

    out = pl.pallas_call(
        kernel,
        out_shape=jax.ShapeDtypeStruct((g, nb, 1, bb), jnp.float32),
        grid_spec=pltpu.PrefetchScalarGridSpec(
            num_scalar_prefetch=0,
            # batch tiles innermost so each modality's weights stay resident
            grid=(g, nb),
            in_specs=[
                pl.BlockSpec((None, dpad, bb), lambda m, i: (m, 0, i)),
                pl.BlockSpec((None, hpad, dpad), lambda m, i: (m, 0, 0), **wkw),
                pl.BlockSpec((None, hpad, hpad), lambda m, i: (m, 0, 0), **wkw),
                pl.BlockSpec((None, hpad, 3), lambda m, i: (m, 0, 0), **wkw),
                # scalar TF bias table lives entirely in SMEM
                pl.BlockSpec(memory_space=pltpu.MemorySpace.SMEM),
            ],
            out_specs=pl.BlockSpec((None, None, 1, bb),
                                   lambda m, i: (m, i, 0, 0)),
        ),
        compiler_params=pltpu.CompilerParams(
            # both axes independent -> megacore (v7x) can shard either one
            dimension_semantics=("parallel", "parallel"),
            vmem_limit_bytes=vmem_limit_bytes),
    )(xt, w1t, w2t, aux, btf)

    # (g, nb, 1, bb) -> (g, batch_pad) -> clip padding -> per-modality (batch, 1)
    out = out.reshape(g, batch_pad)[:, :batch]
    return tuple(out[i][:, None] for i in range(g))


def _plan_group(batch, g, dpad, hpad, w_itemsize, budget, requested_bb):
    """Pick (batch_block, single_buffer_weights, tf_on_mxu) for one group."""
    bb_cap = _round_up(min(max(batch, 1), 1024), 128)      # lane-aligned tiles
    if requested_bb is not None:
        bb_cap = max(128, min(bb_cap, _round_up(requested_bb, 128)))

    # Per-buffer VMEM bytes of the modality-resident weight blocks
    # (aux's lane dim pads to 128 in VMEM).
    w_bytes = (hpad * dpad + hpad * hpad) * w_itemsize + hpad * 128 * 4
    single_buffer_weights = (2 * w_bytes > budget // 2)
    nw = 1 if single_buffer_weights else 2

    bb = bb_cap
    while bb > 128:
        xt_bytes = 2 * dpad * bb * w_itemsize     # double-buffered input tile
        out_bytes = 2 * 8 * bb * 4                # (1, bb) pads to 8 sublanes
        tmp_bytes = 3 * hpad * bb * 4             # h1/h2/TF f32 temporaries
        if nw * w_bytes + xt_bytes + out_bytes + tmp_bytes <= budget:
            break
        bb -= 128

    if g == 1 and batch > 128:
        # keep >= 2 steps on a 'parallel' axis so both v7x TensorCores get work
        bb = min(bb, max(128, _round_up(-(-batch // 2), 128)))

    tf_on_mxu = hpad >= 1024
    return bb, single_buffer_weights, tf_on_mxu


# ----------------------------------------------------------------------------
# Parameter init / packing
# ----------------------------------------------------------------------------
def init_discriminator_params(cfg, key):
    """Parameter init mirroring the module's __init__ shapes (math layout)."""
    dim_hid = int(cfg["parameters"]["dim_hid"])
    dim_out = int(cfg["parameters"]["dim_out"])
    params = {}
    for idx, (m, d) in enumerate(cfg["modals"].items()):
        d = int(d)
        ks = jax.random.split(jax.random.fold_in(key, idx), 8)
        s1 = 1.0 / jnp.sqrt(d)
        s2 = 1.0 / jnp.sqrt(dim_hid)
        params[m] = dict(
            # firstLayers[m]: Linear(d,H) -> ReLU -> Linear(H,H) -> ReLU
            w1=jax.random.uniform(ks[0], (d, dim_hid), jnp.float32, -s1, s1),
            b1=jax.random.uniform(ks[1], (1, dim_hid), jnp.float32, -s1, s1),
            w2=jax.random.uniform(ks[2], (dim_hid, dim_hid), jnp.float32, -s2, s2),
            b2=jax.random.uniform(ks[3], (1, dim_hid), jnp.float32, -s2, s2),
            # TF[m]: Linear(H, 1)
            wtf=jax.random.uniform(ks[4], (dim_hid, 1), jnp.float32, -s2, s2),
            btf=jax.random.uniform(ks[5], (1, 1), jnp.float32, -s2, s2),
            # AC[m]: Linear(H, dim_out) -- built but never applied by forward()
            wac=jax.random.uniform(ks[6], (dim_hid, dim_out), jnp.float32, -s2, s2),
            bac=jax.random.uniform(ks[7], (1, dim_out), jnp.float32, -s2, s2),
        )
    return params


def pack_discriminator_params(params, modal_order=None, param_dtype=None,
                              mxu_align=128):
    """Stack / pad per-modality weights ONCE (outside the hot path).

    * Weights are stored transposed (output dim on sublanes), zero-padded to
      MXU-aligned dims (`mxu_align`; use 256 on v6e/v7x for best MXU fill).
    * Modalities are bucketed by padded dim_in so heterogeneous input dims do
      not inflate each other's DMA / K passes.
    * b1, b2, wtf are merged into one (G, H_pad, 3) f32 block; btf is a scalar
      table.  Weights default to bf16 when dim_hid >= 256, else f32.
    """
    names = tuple(params.keys()) if modal_order is None else tuple(modal_order)
    dim_hid = int(params[names[0]]["w1"].shape[1])
    hpad = _round_up(dim_hid, mxu_align)
    if param_dtype is None:
        param_dtype = jnp.bfloat16 if dim_hid >= 256 else jnp.float32

    order = {}
    for m in names:
        d = int(params[m]["w1"].shape[0])
        order.setdefault(_round_up(d, mxu_align), []).append(m)

    buckets = {}
    modal_to_bucket = {}
    for dpad, bnames in order.items():
        g = len(bnames)
        w1t = jnp.zeros((g, hpad, dpad), param_dtype)
        w2t = jnp.zeros((g, hpad, hpad), param_dtype)
        aux = jnp.zeros((g, hpad, 3), jnp.float32)       # [b1 | b2 | wtf]
        btf = jnp.zeros((g,), jnp.float32)
        for i, m in enumerate(bnames):
            p = params[m]
            d = int(p["w1"].shape[0])
            w1t = w1t.at[i, :dim_hid, :d].set(p["w1"].T.astype(param_dtype))
            w2t = w2t.at[i, :dim_hid, :dim_hid].set(p["w2"].T.astype(param_dtype))
            aux = aux.at[i, :dim_hid, 0].set(p["b1"].reshape(dim_hid))
            aux = aux.at[i, :dim_hid, 1].set(p["b2"].reshape(dim_hid))
            aux = aux.at[i, :dim_hid, 2].set(p["wtf"].reshape(dim_hid))
            btf = btf.at[i].set(p["btf"].reshape(()))
            modal_to_bucket[m] = (dpad, i)
        buckets[dpad] = dict(names=tuple(bnames), w1t=w1t, w2t=w2t,
                             aux=aux, btf=btf)

    return dict(names=names, dim_hid=dim_hid, hpad=hpad,
                param_dtype=param_dtype, mxu_align=mxu_align,
                buckets=buckets, modal_to_bucket=modal_to_bucket)


# ----------------------------------------------------------------------------
# Public forward (replicates Discriminator.forward)
# ----------------------------------------------------------------------------
def discriminator_forward(packed, inputs, *, batch_block=None):
    """Returns (retTF, retAC) dicts, exactly like the PyTorch forward()."""
    modal_to_bucket = packed["modal_to_bucket"]
    for m in inputs:
        if m not in modal_to_bucket:
            # matches PyTorch: self.firstLayers[m] on an unknown key raises
            raise KeyError(f"unknown modality: {m!r}")

    # Group by (dim_in bucket, batch size): each group = ONE fused pallas_call.
    groups = {}
    for m, x in inputs.items():
        dpad, _ = modal_to_bucket[m]
        groups.setdefault((dpad, int(x.shape[0])), []).append(m)

    budget = _vmem_budget_bytes()
    vmem_limit = int(budget)
    hpad = packed["hpad"]
    w_itemsize = jnp.dtype(packed["param_dtype"]).itemsize

    retTF = {}
    for (dpad, batch), gnames in groups.items():
        bucket = packed["buckets"][dpad]
        # normalize to bucket order so the all-present case needs no gather
        gnames = sorted(gnames, key=lambda m: modal_to_bucket[m][1])
        idxs = tuple(modal_to_bucket[m][1] for m in gnames)
        full = idxs == tuple(range(len(bucket["names"])))
        sel = None if full else jnp.asarray(idxs, jnp.int32)

        bb, single_buf, tf_on_mxu = _plan_group(
            batch, len(gnames), dpad, hpad, w_itemsize, budget, batch_block)

        xs = tuple(inputs[m] for m in gnames)
        outs = _forward_group_jit(
            bucket["w1t"], bucket["w2t"], bucket["aux"], bucket["btf"],
            xs, sel,
            bb=bb, take_weights=not full, tf_on_mxu=tf_on_mxu,
            single_buffer_weights=single_buf, vmem_limit_bytes=vmem_limit)
        for m, o in zip(gnames, outs):
            retTF[m] = o

    # Exact reproduction of the PyTorch quirk: forward() applies TF[m] for
    # BOTH outputs, so the AC result equals the TF result (AC heads unused).
    retAC = dict(retTF)
    return retTF, retAC


def _reference_forward(params, inputs):
    """Pure-JAX reference for correctness checking."""
    retTF = {}
    for m, x in inputs.items():
        p = params[m]
        h = jnp.maximum(x @ p["w1"] + p["b1"], 0.0)
        h = jnp.maximum(h @ p["w2"] + p["b2"], 0.0)
        retTF[m] = h @ p["wtf"] + p["btf"]
    return retTF, dict(retTF)


if __name__ == "__main__":
    cfg = {
        "modals": {"audio": 16, "text": 24},
        "parameters": {"dim_hid": 32, "dim_out": 4},
    }
    batch = 8

    key = jax.random.PRNGKey(0)
    pkey, xkey = jax.random.split(key)
    params = init_discriminator_params(cfg, pkey)
    # f32 params here so the tight tolerance check vs the f32 reference holds;
    # pack_discriminator_params auto-selects bf16 for non-toy widths.
    packed = pack_discriminator_params(params, param_dtype=jnp.float32)

    inputs = {}
    for i, (m, d) in enumerate(cfg["modals"].items()):
        inputs[m] = jax.random.normal(jax.random.fold_in(xkey, i),
                                      (batch, int(d)), jnp.float32)

    retTF, retAC = discriminator_forward(packed, inputs)
    jax.block_until_ready(retTF)
    jax.block_until_ready(retAC)

    refTF, refAC = _reference_forward(params, inputs)
    for m in cfg["modals"]:
        assert retTF[m].shape == (batch, 1), (m, retTF[m].shape)
        assert retAC[m].shape == (batch, 1), (m, retAC[m].shape)
        assert jnp.allclose(retTF[m], refTF[m], atol=1e-4, rtol=1e-4), m
        assert jnp.allclose(retAC[m], refAC[m], atol=1e-4, rtol=1e-4), m

    print("KERNEL_OK")
</pallas_src>

<mosaic_0001>
module attributes {stable_mosaic.version = 11 : i64} {
  func.func @_disc_fused_kernel(%arg0: i32, %arg1: i32, %arg2: memref<1x128x128xf32, #tpu.memory_space<vmem>>, %arg3: memref<1x128x128xf32, #tpu.memory_space<vmem>>, %arg4: memref<1x128x128xf32, #tpu.memory_space<vmem>>, %arg5: memref<1x128x3xf32, #tpu.memory_space<vmem>>, %arg6: memref<2xf32, #tpu.memory_space<smem>>, %arg7: memref<1x1x1x128xf32, #tpu.memory_space<vmem>>) attributes {dimension_semantics = [#tpu.dimension_semantics<parallel>, #tpu.dimension_semantics<parallel>], iteration_bounds = array<i64: 2, 1>, scalar_prefetch = 0 : i64, scratch_operands = 0 : i64, tpu.core_type = #tpu.core_type<tc>, window_params = [{transform_indices = @transform_0, window_bounds = array<i64: 1, 128, 128>}, {transform_indices = @transform_1, window_bounds = array<i64: 1, 128, 128>}, {transform_indices = @transform_2, window_bounds = array<i64: 1, 128, 128>}, {transform_indices = @transform_3, window_bounds = array<i64: 1, 128, 3>}, {transform_indices = @transform_4, window_bounds = array<i64: 2>}, {transform_indices = @transform_5, window_bounds = array<i64: 1, 1, 1, 128>}]} {
    %c0 = arith.constant 0 : index
    %c0_0 = arith.constant 0 : index
    %c0_1 = arith.constant 0 : index
    %0 = vector.load %arg5[%c0, %c0_0, %c0_1] : memref<1x128x3xf32, #tpu.memory_space<vmem>>, vector<1x128x3xf32>
    %1 = vector.shape_cast %0 : vector<1x128x3xf32> to vector<128x3xf32>
    %2 = vector.extract_strided_slice %1 {offsets = [0, 0], sizes = [128, 1], strides = [1, 1]} : vector<128x3xf32> to vector<128x1xf32>
    %3 = vector.extract_strided_slice %1 {offsets = [0, 1], sizes = [128, 1], strides = [1, 1]} : vector<128x3xf32> to vector<128x1xf32>
    %4 = vector.extract_strided_slice %1 {offsets = [0, 2], sizes = [128, 1], strides = [1, 1]} : vector<128x3xf32> to vector<128x1xf32>
    %c0_2 = arith.constant 0 : index
    %c0_3 = arith.constant 0 : index
    %c0_4 = arith.constant 0 : index
    %5 = vector.load %arg3[%c0_2, %c0_3, %c0_4] : memref<1x128x128xf32, #tpu.memory_space<vmem>>, vector<1x128x128xf32>
    %6 = vector.shape_cast %5 : vector<1x128x128xf32> to vector<128x128xf32>
    %c0_5 = arith.constant 0 : index
    %c0_6 = arith.constant 0 : index
    %c0_7 = arith.constant 0 : index
    %7 = vector.load %arg2[%c0_5, %c0_6, %c0_7] : memref<1x128x128xf32, #tpu.memory_space<vmem>>, vector<1x128x128xf32>
    %8 = vector.shape_cast %7 : vector<1x128x128xf32> to vector<128x128xf32>
    %cst = arith.constant dense<0.000000e+00> : vector<128x128xf32>
    %9 = tpu.matmul %6, %8, %cst {dimension_numbers = #tpu.dot_dimension_numbers<[1], [0], [0], [1], [0, 0, 1, 1], [], []>} : vector<128x128xf32>, vector<128x128xf32>, vector<128x128xf32> -> vector<128x128xf32>
    %10 = vector.broadcast %2 : vector<128x1xf32> to vector<128x128xf32>
    %11 = arith.addf %9, %10 : vector<128x128xf32>
    %cst_8 = arith.constant 0.000000e+00 : f32
    %12 = vector.broadcast %cst_8 : f32 to vector<128x128xf32>
    %13 = arith.maximumf %11, %12 : vector<128x128xf32>
    %c0_9 = arith.constant 0 : index
    %c0_10 = arith.constant 0 : index
    %c0_11 = arith.constant 0 : index
    %14 = vector.load %arg4[%c0_9, %c0_10, %c0_11] : memref<1x128x128xf32, #tpu.memory_space<vmem>>, vector<1x128x128xf32>
    %15 = vector.shape_cast %14 : vector<1x128x128xf32> to vector<128x128xf32>
    %cst_12 = arith.constant dense<0.000000e+00> : vector<128x128xf32>
    %16 = tpu.matmul %15, %13, %cst_12 {dimension_numbers = #tpu.dot_dimension_numbers<[1], [0], [0], [1], [0, 0, 1, 1], [], []>} : vector<128x128xf32>, vector<128x128xf32>, vector<128x128xf32> -> vector<128x128xf32>
    %17 = vector.broadcast %3 : vector<128x1xf32> to vector<128x128xf32>
    %18 = arith.addf %16, %17 : vector<128x128xf32>
    %cst_13 = arith.constant 0.000000e+00 : f32
    %19 = vector.broadcast %cst_13 : f32 to vector<128x128xf32>
    %20 = arith.maximumf %18, %19 : vector<128x128xf32>
    %21 = vector.broadcast %4 : vector<128x1xf32> to vector<128x128xf32>
    %22 = arith.mulf %20, %21 : vector<128x128xf32>
    %cst_14 = arith.constant dense<0.000000e+00> : vector<128xf32>
    %23 = vector.multi_reduction <add>, %22, %cst_14 [0] : vector<128x128xf32> to vector<128xf32>
    %24 = vector.shape_cast %23 : vector<128xf32> to vector<1x128xf32>
    %25 = arith.index_cast %arg0 : i32 to index
    %26 = memref.load %arg6[%25] : memref<2xf32, #tpu.memory_space<smem>>
    %27 = vector.broadcast %26 : f32 to vector<1x128xf32>
    %28 = arith.addf %24, %27 : vector<1x128xf32>
    %c0_15 = arith.constant 0 : index
    %c0_16 = arith.constant 0 : index
    %c0_17 = arith.constant 0 : index
    %c0_18 = arith.constant 0 : index
    %29 = vector.load %arg7[%c0_15, %c0_16, %c0_17, %c0_18] : memref<1x1x1x128xf32, #tpu.memory_space<vmem>>, vector<1x1x1x128xf32>
    %30 = vector.shape_cast %29 : vector<1x1x1x128xf32> to vector<1x128xf32>
    %31 = vector.shape_cast %28 : vector<1x128xf32> to vector<1x1x1x128xf32>
    tpu.vector_store %arg7[%c0_15, %c0_16, %c0_17, %c0_18], %31 {strides = array<i32>} : memref<1x1x1x128xf32, #tpu.memory_space<vmem>>, vector<1x1x1x128xf32>,
    return
  }
  func.func @transform_0(%arg0: i32, %arg1: i32) -> (i32, i32, i32) {
    %c0_i32 = arith.constant 0 : i32
    %c0_i32_0 = arith.constant 0 : i32
    return %arg0, %c0_i32, %arg1 : i32, i32, i32
  }
  func.func @transform_1(%arg0: i32, %arg1: i32) -> (i32, i32, i32) {
    %c0_i32 = arith.constant 0 : i32
    %c0_i32_0 = arith.constant 0 : i32
    %c0_i32_1 = arith.constant 0 : i32
    return %arg0, %c0_i32, %c0_i32_0 : i32, i32, i32
  }
  func.func @transform_2(%arg0: i32, %arg1: i32) -> (i32, i32, i32) {
    %c0_i32 = arith.constant 0 : i32
    %c0_i32_0 = arith.constant 0 : i32
    %c0_i32_1 = arith.constant 0 : i32
    return %arg0, %c0_i32, %c0_i32_0 : i32, i32, i32
  }
  func.func @transform_3(%arg0: i32, %arg1: i32) -> (i32, i32, i32) {
    %c0_i32 = arith.constant 0 : i32
    %c0_i32_0 = arith.constant 0 : i32
    %c0_i32_1 = arith.constant 0 : i32
    return %arg0, %c0_i32, %c0_i32_0 : i32, i32, i32
  }
  func.func @transform_4(%arg0: i32, %arg1: i32) -> i32 {
    %c0_i32 = arith.constant 0 : i32
    %c0_i32_0 = arith.constant 0 : i32
    return %c0_i32 : i32
  }
  func.func @transform_5(%arg0: i32, %arg1: i32) -> (i32, i32, i32, i32) {
    %c0_i32 = arith.constant 0 : i32
    %c0_i32_0 = arith.constant 0 : i32
    %c0_i32_1 = arith.constant 0 : i32
    return %arg0, %arg1, %c0_i32, %c0_i32_0 : i32, i32, i32, i32
  }
}

</mosaic_0001>

<llo_original>
// kernel: _forward_group_jit.1
$region0: #{_forward_group_jit.1}
  #allocation0 [shape = 'u32[]', space=smem, size = 0x4, offset = 0x4, fixed_abs, tag = 'smem constant byte address 0x4 - core index']
  #allocation1 [shape = 'u32[144,128]{1,0:T(1,128)}', space=vmem, size = 0x12000, scoped, tag = 'internal scratch']
  %s0 = inlined_call_operand.vmem [shape: f32[2,128,128], index: 0, kind: input, shape index: {}]
  %s1 = inlined_call_operand.vmem [shape: f32[2,128,128], index: 1, kind: input, shape index: {}]
  %s2 = inlined_call_operand.vmem [shape: f32[2,128,128], index: 2, kind: input, shape index: {}]
  %s3 = inlined_call_operand.vmem [shape: f32[2,128,3], index: 3, kind: input, shape index: {}]
  %s4 = inlined_call_operand.vmem [shape: f32[2], index: 4, kind: input, shape index: {}]
  %s5 = inlined_call_operand.vmem [shape: f32[2,1,1,128], index: 5, kind: output, shape index: {}]
  %s6 = sld [smem:[#allocation0]]
  $region57: #{_forward_group_jit.1} parent=0
    _
  %s8 = ssub.s32 1, %s6
  %s9 = scalar_select 0, %s8, %s6
  $region1: #{_forward_group_jit.1} parent=0
    #allocation2 [shape = 'u8[512]{0}', space=smem, size = 0x200, scoped, tag = 'input window, operand 4, single buffered']
    #allocation3 [shape = 's32[2]{0}', space=sflag, size = 0x8, scoped, tag = 'scoped memory for _forward_group_jit.1']
    %10 = vsyncpa [#allocation3], 0
    loop: start=0, step=1, limit=4
    $region2: #{_forward_group_jit.1} parent=1 // loop_pre_header
      _
    $region3: #{_forward_group_jit.1} parent=1 // loop_header
      %s12 = sphi 0, %s16
      %p13 = scmp.ge.s32.totalorder %s12, 4
      %s19 = sphi 0, %s31
      %s20 = sphi 0, %s27
      %s21 = sphi 0, %s19
      %s22 = sphi 0, %s20
      %s23 = sphi 0, %s21
      %s24 = sphi 0, %s22
      %s36 = sphi 0, %s38
      %s39 = sphi 0, %s36
      %s40 = sphi 0, %s39
      %s56 = sphi 0, %s40
      %s62 = sphi 0, %s64
      %s65 = sphi 0, %s62
      %s66 = sphi 0, %s65
      %s82 = sphi 0, %s66
      %s88 = sphi 0, %s90
      %s91 = sphi 0, %s88
      %s92 = sphi 0, %s91
      %s108 = sphi 0, %s92
      %s114 = sphi 0, %s116
      %s117 = sphi 0, %s114
      %s118 = sphi 0, %s117
      %s134 = sphi 0, %s118
      %s138 = sphi 0, %s138
      %s140 = sphi 0, %s138
      %s141 = sphi 0, %s140
      %s155 = sphi 0, %s141
      %s163 = sphi 0, %s165
      %s166 = sphi 0, %s163
      %s167 = sphi 0, %s166
      %s183 = sphi 0, %s167
    $region4: #{_forward_group_jit.1} parent=1 // loop_header_branch
      %15 = sbr.rel (%p13) target = $region8
    $region5: #{_forward_group_jit.1} parent=1 // loop_body
      %s17 = ssub.s32 %s12, 1
      %s18 = ssub.s32 %s12, 2
      %s25 = sadd.s32 1, %s20
      %p26 = scmp.ge.s32.totalorder %s25, 1
      %s27 = scalar_select %p26, 0, %s25
      %s28 = sadd.s32 1, %s19
      %s29 = scalar_select %p26, %s28, %s19
      %p30 = scmp.ge.s32.totalorder %s29, 2
      %s31 = scalar_select %p30, 0, %s29
      %s32 = ssub.s32 %s19, %s31
      %s33 = ssub.s32 %s20, %s27
      %s34 = sor.u32 %s32, %s33
      %p35 = scmp.eq.s32.totalorder %s34, 0
      %s37 = sadd.s32 %s36, 1
      %s38 = scalar_select %p35, %s36, %s37
      %p41 = pneg %p35
      %p42 = scmp.eq.s32.totalorder %s12, 1
      %p43 = por %p41, %p42
      %p44 = scmp.ne.s32.totalorder %s36, %s39
      %p45 = scmp.eq.s32.totalorder %s12, 0
      %p46 = por %p44, %p45
      %p47 = scmp.ne.s32.totalorder %s36, %s39
      %p48 = scmp.eq.s32.totalorder %s17, 1
      %p49 = por %p47, %p48
      %p50 = scmp.ne.s32.totalorder %s39, %s40
      %p51 = scmp.eq.s32.totalorder %s17, 0
      %p52 = por %p50, %p51
      %p53 = scmp.ne.s32.totalorder %s39, %s40
      %p54 = scmp.eq.s32.totalorder %s18, 1
      %p55 = por %p53, %p54
      %p57 = scmp.ne.s32.totalorder %s40, %s56
      %p58 = scmp.eq.s32.totalorder %s18, 0
      %p59 = por %p57, %p58
      %s60 = ssub.s32 %s19, %s31
      %p61 = scmp.eq.s32.totalorder %s60, 0
      %s63 = sadd.s32 %s62, 1
      %s64 = scalar_select %p61, %s62, %s63
      %p67 = pneg %p61
      %p68 = scmp.eq.s32.totalorder %s12, 1
      %p69 = por %p67, %p68
      %p70 = scmp.ne.s32.totalorder %s62, %s65
      %p71 = scmp.eq.s32.totalorder %s12, 0
      %p72 = por %p70, %p71
      %p73 = scmp.ne.s32.totalorder %s62, %s65
      %p74 = scmp.eq.s32.totalorder %s17, 1
      %p75 = por %p73, %p74
      %p76 = scmp.ne.s32.totalorder %s65, %s66
      %p77 = scmp.eq.s32.totalorder %s17, 0
      %p78 = por %p76, %p77
      %p79 = scmp.ne.s32.totalorder %s65, %s66
      %p80 = scmp.eq.s32.totalorder %s18, 1
      %p81 = por %p79, %p80
      %p83 = scmp.ne.s32.totalorder %s66, %s82
      %p84 = scmp.eq.s32.totalorder %s18, 0
      %p85 = por %p83, %p84
      %s86 = ssub.s32 %s19, %s31
      %p87 = scmp.eq.s32.totalorder %s86, 0
      %s89 = sadd.s32 %s88, 1
      %s90 = scalar_select %p87, %s88, %s89
      %p93 = pneg %p87
      %p94 = scmp.eq.s32.totalorder %s12, 1
      %p95 = por %p93, %p94
      %p96 = scmp.ne.s32.totalorder %s88, %s91
      %p97 = scmp.eq.s32.totalorder %s12, 0
      %p98 = por %p96, %p97
      %p99 = scmp.ne.s32.totalorder %s88, %s91
      %p100 = scmp.eq.s32.totalorder %s17, 1
      %p101 = por %p99, %p100
      %p102 = scmp.ne.s32.totalorder %s91, %s92
      %p103 = scmp.eq.s32.totalorder %s17, 0
      %p104 = por %p102, %p103
      %p105 = scmp.ne.s32.totalorder %s91, %s92
      %p106 = scmp.eq.s32.totalorder %s18, 1
      %p107 = por %p105, %p106
      %p109 = scmp.ne.s32.totalorder %s92, %s108
      %p110 = scmp.eq.s32.totalorder %s18, 0
      %p111 = por %p109, %p110
      %s112 = ssub.s32 %s19, %s31
      %p113 = scmp.eq.s32.totalorder %s112, 0
      %s115 = sadd.s32 %s114, 1
      %s116 = scalar_select %p113, %s114, %s115
      %p119 = pneg %p113
      %p120 = scmp.eq.s32.totalorder %s12, 1
      %p121 = por %p119, %p120
      %p122 = scmp.ne.s32.totalorder %s114, %s117
      %p123 = scmp.eq.s32.totalorder %s12, 0
      %p124 = por %p122, %p123
      %p125 = scmp.ne.s32.totalorder %s114, %s117
      %p126 = scmp.eq.s32.totalorder %s17, 1
      %p127 = por %p125, %p126
      %p128 = scmp.ne.s32.totalorder %s117, %s118
      %p129 = scmp.eq.s32.totalorder %s17, 0
      %p130 = por %p128, %p129
      %p131 = scmp.ne.s32.totalorder %s117, %s118
      %p132 = scmp.eq.s32.totalorder %s18, 1
      %p133 = por %p131, %p132
      %p135 = scmp.ne.s32.totalorder %s118, %s134
      %p136 = scmp.eq.s32.totalorder %s18, 0
      %p137 = por %p135, %p136
      %s139 = sadd.s32 %s138, 1
      %p142 = scmp.eq.s32.totalorder %s12, 1
      %p143 = scmp.ne.s32.totalorder %s138, %s140
      %p144 = scmp.eq.s32.totalorder %s12, 0
      %p145 = por %p143, %p144
      %p146 = scmp.ne.s32.totalorder %s138, %s140
      %p147 = scmp.eq.s32.totalorder %s17, 1
      %p148 = por %p146, %p147
      %p149 = scmp.ne.s32.totalorder %s140, %s141
      %p150 = scmp.eq.s32.totalorder %s17, 0
      %p151 = por %p149, %p150
      %p152 = scmp.ne.s32.totalorder %s140, %s141
      %p153 = scmp.eq.s32.totalorder %s18, 1
      %p154 = por %p152, %p153
      %p156 = scmp.ne.s32.totalorder %s141, %s155
      %p157 = scmp.eq.s32.totalorder %s18, 0
      %p158 = por %p156, %p157
      %s159 = ssub.s32 %s19, %s31
      %s160 = ssub.s32 %s20, %s27
      %s161 = sor.u32 %s159, %s160
      %p162 = scmp.eq.s32.totalorder %s161, 0
      %s164 = sadd.s32 %s163, 1
      %s165 = scalar_select %p162, %s163, %s164
      %p168 = pneg %p162
      %p169 = scmp.eq.s32.totalorder %s12, 1
      %p170 = por %p168, %p169
      %p171 = scmp.ne.s32.totalorder %s163, %s166
      %p172 = scmp.eq.s32.totalorder %s12, 0
      %p173 = por %p171, %p172
      %p174 = scmp.ne.s32.totalorder %s163, %s166
      %p175 = scmp.eq.s32.totalorder %s17, 1
      %p176 = por %p174, %p175
      %p177 = scmp.ne.s32.totalorder %s166, %s167
      %p178 = scmp.eq.s32.totalorder %s17, 0
      %p179 = por %p177, %p178
      %p180 = scmp.ne.s32.totalorder %s166, %s167
      %p181 = scmp.eq.s32.totalorder %s18, 1
      %p182 = por %p180, %p181
      %p184 = scmp.ne.s32.totalorder %s167, %s183
      %p185 = scmp.eq.s32.totalorder %s18, 0
      %p186 = por %p184, %p185
      %p187 = scmp.le.s32.totalorder 1, %s12
      %p188 = scmp.lt.s32.totalorder %s12, 3
      %p189 = pnand %p187, %p188
      %p190 = pneg %p189
      // Predicated region
      $region9: #{_forward_group_jit.1} parent=5 // pred_check
        _
      $region10: #{_forward_group_jit.1} parent=5 // pred_check_branch
        %192 = sbr.rel (%p189) target = $region12
      $region11: #{_forward_group_jit.1} parent=5 // pred_region
        %s193 = ssub.s32 %s12, 1
        // Predicated region
        $region13: #{_forward_group_jit.1} parent=11 // pred_check
          %p194 = pneg %p151
        $region14: #{_forward_group_jit.1} parent=11 // pred_check_branch
          %196 = sbr.rel (%p194) target = $region16
        $region15: #{_forward_group_jit.1} parent=11 // pred_region
          %s198 = ssub.s32 16, 16
          %199 = vsyncadd [#allocation3], %s198
          %s201 = sshll.u32 %s4, 4
          %s202 = int_to_ptr.vmem [resolvable:$true] %s201
          %204 = dma.vmem_to_smem %s202, 16, [#allocation2], [#allocation3]
        $region16: #{_forward_group_jit.1} parent=11 // pred_fallthru
          _
      $region12: #{_forward_group_jit.1} parent=5 // pred_fallthru
        _
      %p205 = scmp.lt.s32.totalorder %s12, 2
      // Predicated region
      $region17: #{_forward_group_jit.1} parent=5 // pred_check
        %p206 = pneg %p205
      $region18: #{_forward_group_jit.1} parent=5 // pred_check_branch
        %208 = sbr.rel (%p206) target = $region20
      $region19: #{_forward_group_jit.1} parent=5 // pred_region
        // Predicated region
        $region21: #{_forward_group_jit.1} parent=19 // pred_check
          %p209 = pneg %p46
        $region22: #{_forward_group_jit.1} parent=19 // pred_check_branch
          %211 = sbr.rel (%p209) target = $region24
        $region23: #{_forward_group_jit.1} parent=19 // pred_region
          %p212 = scmp.lt.s32.totalorder %s19, 1
          %s213 = scalar_select %p212, %s19, 1
          %p214 = scmp.lt.s32.totalorder %s20, 0
          %s215 = scalar_select %p214, %s20, 0
          %s216 = smul.addr %s213, 16
          %s217 = sadd.s32 %s215, %s216
          %s218 = smul.addr %s217, 8
          %s219 = scalar_lea.vmem %s0, %s218
        $region24: #{_forward_group_jit.1} parent=19 // pred_fallthru
          _
        // Predicated region
        $region25: #{_forward_group_jit.1} parent=19 // pred_check
          %p220 = pneg %p72
        $region26: #{_forward_group_jit.1} parent=19 // pred_check_branch
          %222 = sbr.rel (%p220) target = $region28
        $region27: #{_forward_group_jit.1} parent=19 // pred_region
          %p223 = scmp.lt.s32.totalorder %s19, 1
          %s224 = scalar_select %p223, %s19, 1
          %s225 = smul.addr %s224, 16
          %s226 = smul.addr %s225, 8
          %s227 = scalar_lea.vmem %s1, %s226
        $region28: #{_forward_group_jit.1} parent=19 // pred_fallthru
          _
        // Predicated region
        $region29: #{_forward_group_jit.1} parent=19 // pred_check
          %p228 = pneg %p98
        $region30: #{_forward_group_jit.1} parent=19 // pred_check_branch
          %230 = sbr.rel (%p228) target = $region32
        $region31: #{_forward_group_jit.1} parent=19 // pred_region
          %p231 = scmp.lt.s32.totalorder %s19, 1
          %s232 = scalar_select %p231, %s19, 1
          %s233 = smul.addr %s232, 16
          %s234 = smul.addr %s233, 8
          %s235 = scalar_lea.vmem %s2, %s234
        $region32: #{_forward_group_jit.1} parent=19 // pred_fallthru
          _
        // Predicated region
        $region33: #{_forward_group_jit.1} parent=19 // pred_check
          %p236 = pneg %p124
        $region34: #{_forward_group_jit.1} parent=19 // pred_check_branch
          %238 = sbr.rel (%p236) target = $region36
        $region35: #{_forward_group_jit.1} parent=19 // pred_region
          %p239 = scmp.lt.s32.totalorder %s19, 1
          %s240 = scalar_select %p239, %s19, 1
          %s241 = smul.addr %s240, 16
          %s242 = smul.addr %s241, 8
          %s243 = scalar_lea.vmem %s3, %s242
        $region36: #{_forward_group_jit.1} parent=19 // pred_fallthru
          _
      $region20: #{_forward_group_jit.1} parent=5 // pred_fallthru
        _
      %p244 = scmp.le.s32.totalorder 1, %s12
      %p245 = scmp.lt.s32.totalorder %s12, 3
      %p246 = pnand %p244, %p245
      %p247 = pneg %p246
      // Predicated region
      $region37: #{_forward_group_jit.1} parent=5 // pred_check
        _
      $region38: #{_forward_group_jit.1} parent=5 // pred_check_branch
        %249 = sbr.rel (%p246) target = $region40
      $region39: #{_forward_group_jit.1} parent=5 // pred_region
        %s250 = ssub.s32 %s12, 1
        // Predicated region
        $region41: #{_forward_group_jit.1} parent=39 // pred_check
          %p251 = pneg %p151
        $region42: #{_forward_group_jit.1} parent=39 // pred_check_branch
          %253 = sbr.rel (%p251) target = $region44
        $region43: #{_forward_group_jit.1} parent=39 // pred_region
          %254 = dma.done [#allocation3], 16
        $region44: #{_forward_group_jit.1} parent=39 // pred_fallthru
          _
        %255 = sfence
        %p256 = scmp.lt.s32.totalorder %s21, 1
        %s257 = scalar_select %p256, %s21, 1
        %p258 = scmp.lt.s32.totalorder %s22, 0
        %s259 = scalar_select %p258, %s22, 0
        %s260 = smul.addr %s257, 16
        %s261 = sadd.s32 %s259, %s260
        %s262 = smul.addr %s261, 8
        %s263 = scalar_lea.vmem %s0, %s262
        %p264 = pneg %p52
        %p265 = pneg %p49
        %p266 = scmp.lt.s32.totalorder %s21, 1
        %s267 = scalar_select %p266, %s21, 1
        %s268 = smul.addr %s267, 16
        %s269 = smul.addr %s268, 8
        %s270 = scalar_lea.vmem %s1, %s269
        %p271 = pneg %p78
        %p272 = pneg %p75
        %p273 = scmp.lt.s32.totalorder %s21, 1
        %s274 = scalar_select %p273, %s21, 1
        %s275 = smul.addr %s274, 16
        %s276 = smul.addr %s275, 8
        %s277 = scalar_lea.vmem %s2, %s276
        %p278 = pneg %p104
        %p279 = pneg %p101
        %p280 = scmp.lt.s32.totalorder %s21, 1
        %s281 = scalar_select %p280, %s21, 1
        %s282 = smul.addr %s281, 16
        %s283 = smul.addr %s282, 8
        %s284 = scalar_lea.vmem %s3, %s283
        %p285 = pneg %p130
        %p286 = pneg %p127
        %p287 = pneg %p151
        %p288 = pneg %p148
        %p289 = pneg %p179
        %p290 = pneg %p176
        %p291 = scmp.lt.s32.totalorder %s21, 1
        %s292 = scalar_select %p291, %s21, 1
        %p293 = scmp.lt.s32.totalorder %s22, 0
        %s294 = scalar_select %p293, %s22, 0
        %s295 = sadd.s32 %s294, %s292
        %s296 = scalar_lea.vmem %s5, %s295
        %p297 = scmp.lt.s32.totalorder %s21, 1
        %s298 = scalar_select %p297, %s21, 1
        %p299 = scmp.lt.s32.totalorder %s22, 0
        %s300 = scalar_select %p299, %s22, 0
        %s301 = smul.addr %s298, 16
        %s302 = sadd.s32 %s300, %s301
        %s303 = smul.addr %s302, 8
        %s304 = scalar_lea.vmem %s0, %s303
        %p305 = scmp.lt.s32.totalorder %s21, 1
        %s306 = scalar_select %p305, %s21, 1
        %s307 = smul.addr %s306, 16
        %s308 = smul.addr %s307, 8
        %s309 = scalar_lea.vmem %s1, %s308
        %p310 = scmp.lt.s32.totalorder %s21, 1
        %s311 = scalar_select %p310, %s21, 1
        %s312 = smul.addr %s311, 16
        %s313 = smul.addr %s312, 8
        %s314 = scalar_lea.vmem %s2, %s313
        %p315 = scmp.lt.s32.totalorder %s21, 1
        %s316 = scalar_select %p315, %s21, 1
        %s317 = smul.addr %s316, 16
        %s318 = smul.addr %s317, 8
        %s319 = scalar_lea.vmem %s3, %s318
        %p320 = scmp.lt.s32.totalorder %s21, 1
        %s321 = scalar_select %p320, %s21, 1
        %p322 = scmp.lt.s32.totalorder %s22, 0
        %s323 = scalar_select %p322, %s22, 0
        %s324 = sadd.s32 %s323, %s321
        %s325 = scalar_lea.vmem %s5, %s324
        %v326 = vld [vmem:[%s319] sm:$0xff]
        %v327 = vld [vmem:[%s319 + $0x8] sm:$0xff]
        %v328 = vld [vmem:[%s319 + $0x10] sm:$0xff]
        %v329 = vld [vmem:[%s319 + $0x18] sm:$0xff]
        %v330 = vld [vmem:[%s319 + $0x20] sm:$0xff]
        %v331 = vld [vmem:[%s319 + $0x28] sm:$0xff]
        %v332 = vld [vmem:[%s319 + $0x30] sm:$0xff]
        %v333 = vld [vmem:[%s319 + $0x38] sm:$0xff]
        %v334 = vld [vmem:[%s319 + $0x40] sm:$0xff]
        %v335 = vld [vmem:[%s319 + $0x48] sm:$0xff]
        %v336 = vld [vmem:[%s319 + $0x50] sm:$0xff]
        %v337 = vld [vmem:[%s319 + $0x58] sm:$0xff]
        %v338 = vld [vmem:[%s319 + $0x60] sm:$0xff]
        %v339 = vld [vmem:[%s319 + $0x68] sm:$0xff]
        %v340 = vld [vmem:[%s319 + $0x70] sm:$0xff]
        %v341 = vld [vmem:[%s319 + $0x78] sm:$0xff]
        %v342 = vld [vmem:[%s309] sm:$0xff]
        %v343 = vld [vmem:[%s309 + $0x8] sm:$0xff]
        %v344 = vld [vmem:[%s309 + $0x10] sm:$0xff]
        %v345 = vld [vmem:[%s309 + $0x18] sm:$0xff]
        %v346 = vld [vmem:[%s309 + $0x20] sm:$0xff]
        %v347 = vld [vmem:[%s309 + $0x28] sm:$0xff]
        %v348 = vld [vmem:[%s309 + $0x30] sm:$0xff]
        %v349 = vld [vmem:[%s309 + $0x38] sm:$0xff]
        %v350 = vld [vmem:[%s309 + $0x40] sm:$0xff]
        %v351 = vld [vmem:[%s309 + $0x48] sm:$0xff]
        %v352 = vld [vmem:[%s309 + $0x50] sm:$0xff]
        %v353 = vld [vmem:[%s309 + $0x58] sm:$0xff]
        %v354 = vld [vmem:[%s309 + $0x60] sm:$0xff]
        %v355 = vld [vmem:[%s309 + $0x68] sm:$0xff]
        %v356 = vld [vmem:[%s309 + $0x70] sm:$0xff]
        %v357 = vld [vmem:[%s309 + $0x78] sm:$0xff]
        %v358 = vld [vmem:[%s304] sm:$0xff]
        %v359 = vld [vmem:[%s304 + $0x8] sm:$0xff]
        %v360 = vld [vmem:[%s304 + $0x10] sm:$0xff]
        %v361 = vld [vmem:[%s304 + $0x18] sm:$0xff]
        %v362 = vld [vmem:[%s304 + $0x20] sm:$0xff]
        %v363 = vld [vmem:[%s304 + $0x28] sm:$0xff]
        %v364 = vld [vmem:[%s304 + $0x30] sm:$0xff]
        %v365 = vld [vmem:[%s304 + $0x38] sm:$0xff]
        %v366 = vld [vmem:[%s304 + $0x40] sm:$0xff]
        %v367 = vld [vmem:[%s304 + $0x48] sm:$0xff]
        %v368 = vld [vmem:[%s304 + $0x50] sm:$0xff]
        %v369 = vld [vmem:[%s304 + $0x58] sm:$0xff]
        %v370 = vld [vmem:[%s304 + $0x60] sm:$0xff]
        %v371 = vld [vmem:[%s304 + $0x68] sm:$0xff]
        %v372 = vld [vmem:[%s304 + $0x70] sm:$0xff]
        %v373 = vld [vmem:[%s304 + $0x78] sm:$0xff]
        %375 = vset.pattern.permute.xlu0 0
        %376 = vperm.xlu0 %375, %v326
        %v377 = vpop.permute.xlu0 %376
        %380 = vset.pattern.permute.xlu0 0
        %381 = vperm.xlu0 %380, %v327
        %v382 = vpop.permute.xlu0 %381
        %385 = vset.pattern.permute.xlu0 0
        %386 = vperm.xlu0 %385, %v328
        %v387 = vpop.permute.xlu0 %386
        %390 = vset.pattern.permute.xlu0 0
        %391 = vperm.xlu0 %390, %v329
        %v392 = vpop.permute.xlu0 %391
        %395 = vset.pattern.permute.xlu0 0
        %396 = vperm.xlu0 %395, %v330
        %v397 = vpop.permute.xlu0 %396
        %400 = vset.pattern.permute.xlu0 0
        %401 = vperm.xlu0 %400, %v331
        %v402 = vpop.permute.xlu0 %401
        %405 = vset.pattern.permute.xlu0 0
        %406 = vperm.xlu0 %405, %v332
        %v407 = vpop.permute.xlu0 %406
        %410 = vset.pattern.permute.xlu0 0
        %411 = vperm.xlu0 %410, %v333
        %v412 = vpop.permute.xlu0 %411
        %415 = vset.pattern.permute.xlu0 0
        %416 = vperm.xlu0 %415, %v334
        %v417 = vpop.permute.xlu0 %416
        %420 = vset.pattern.permute.xlu0 0
        %421 = vperm.xlu0 %420, %v335
        %v422 = vpop.permute.xlu0 %421
        %425 = vset.pattern.permute.xlu0 0
        %426 = vperm.xlu0 %425, %v336
        %v427 = vpop.permute.xlu0 %426
        %430 = vset.pattern.permute.xlu0 0
        %431 = vperm.xlu0 %430, %v337
        %v432 = vpop.permute.xlu0 %431
        %435 = vset.pattern.permute.xlu0 0
        %436 = vperm.xlu0 %435, %v338
        %v437 = vpop.permute.xlu0 %436
        %440 = vset.pattern.permute.xlu0 0
        %441 = vperm.xlu0 %440, %v339
        %v442 = vpop.permute.xlu0 %441
        %445 = vset.pattern.permute.xlu0 0
        %446 = vperm.xlu0 %445, %v340
        %v447 = vpop.permute.xlu0 %446
        %450 = vset.pattern.permute.xlu0 0
        %451 = vperm.xlu0 %450, %v341
        %v452 = vpop.permute.xlu0 %451
        %454 = vmatprep.subr.mxu0 0.0
        %455 = vmatpush1.msra.mxu0 %v373
        %456 = vmatprep.subr.mxu0 0.0
        %457 = vmatpush1.msra.mxu0 %v372
        %458 = vmatprep.subr.mxu0 0.0
        %459 = vmatpush1.msra.mxu0 %v371
        %460 = vmatprep.subr.mxu0 0.0
        %461 = vmatpush1.msra.mxu0 %v370
        %462 = vmatprep.subr.mxu0 0.0
        %463 = vmatpush1.msra.mxu0 %v369
        %464 = vmatprep.subr.mxu0 0.0
        %465 = vmatpush1.msra.mxu0 %v368
        %466 = vmatprep.subr.mxu0 0.0
        %467 = vmatpush1.msra.mxu0 %v367
        %468 = vmatprep.subr.mxu0 0.0
        %469 = vmatpush1.msra.mxu0 %v366
        %470 = vmatprep.subr.mxu0 0.0
        %471 = vmatpush1.msra.mxu0 %v365
        %472 = vmatprep.subr.mxu0 0.0
        %473 = vmatpush1.msra.mxu0 %v364
        %474 = vmatprep.subr.mxu0 0.0
        %475 = vmatpush1.msra.mxu0 %v363
        %476 = vmatprep.subr.mxu0 0.0
        %477 = vmatpush1.msra.mxu0 %v362
        %478 = vmatprep.subr.mxu0 0.0
        %479 = vmatpush1.msra.mxu0 %v361
        %480 = vmatprep.subr.mxu0 0.0
        %481 = vmatpush1.msra.mxu0 %v360
        %482 = vmatprep.subr.mxu0 0.0
        %483 = vmatpush1.msra.mxu0 %v359
        %484 = vmatprep.subr.mxu0 0.0
        %485 = vmatpush1.msra.mxu0 %v358
        %486 = vmatprep.subr.mxu0 0.0
        %487 = vmatpush2.msra.mxu0 0.0
        %488 = vmatprep.subr.mxu0 0.0
        %489 = vmatpush2.msra.mxu0 0.0
        %490 = vmatprep.subr.mxu0 0.0
        %491 = vmatpush2.msra.mxu0 0.0
        %492 = vmatprep.subr.mxu0 0.0
        %493 = vmatpush2.msra.mxu0 0.0
        %494 = vmatprep.subr.mxu0 0.0
        %495 = vmatpush2.msra.mxu0 0.0
        %496 = vmatprep.subr.mxu0 0.0
        %497 = vmatpush2.msra.mxu0 0.0
        %498 = vmatprep.subr.mxu0 0.0
        %499 = vmatpush2.msra.mxu0 0.0
        %500 = vmatprep.subr.mxu0 0.0
        %501 = vmatpush2.msra.mxu0 0.0
        %502 = vmatprep.subr.mxu0 0.0
        %503 = vmatpush2.msra.mxu0 0.0
        %504 = vmatprep.subr.mxu0 0.0
        %505 = vmatpush2.msra.mxu0 0.0
        %506 = vmatprep.subr.mxu0 0.0
        %507 = vmatpush2.msra.mxu0 0.0
        %508 = vmatprep.subr.mxu0 0.0
        %509 = vmatpush2.msra.mxu0 0.0
        %510 = vmatprep.subr.mxu0 0.0
        %511 = vmatpush2.msra.mxu0 0.0
        %512 = vmatprep.subr.mxu0 0.0
        %513 = vmatpush2.msra.mxu0 0.0
        %514 = vmatprep.subr.mxu0 0.0
        %515 = vmatpush2.msra.mxu0 0.0
        %516 = vmatprep.subr.mxu0 0.0
        %517 = vmatpush2.msra.mxu0 0.0
        %518 = vmatprep.mubr.f32.mxu0 0.0
        %519 = vmatmul.mubr.f32.gmra.mxu0 %v342
        %v520 = vpop.f32.mrf.mxu0
        %v521 = vadd.f32 %v377, %v520
        %v522 = vpop.f32.mrf.mxu0
        %523 = vmatprep.mubr.f32.mxu0 0.0
        %524 = vmatmul.mubr.f32.gmra.mxu0 %v343
        %v525 = vpop.f32.mrf.mxu0
        %v526 = vadd.f32 %v382, %v525
        %v527 = vpop.f32.mrf.mxu0
        %528 = vmatprep.mubr.f32.mxu0 0.0
        %529 = vmatmul.mubr.f32.gmra.mxu0 %v344
        %v530 = vpop.f32.mrf.mxu0
        %v531 = vadd.f32 %v387, %v530
        %v532 = vpop.f32.mrf.mxu0
        %533 = vmatprep.mubr.f32.mxu0 0.0
        %534 = vmatmul.mubr.f32.gmra.mxu0 %v345
        %v535 = vpop.f32.mrf.mxu0
        %v536 = vadd.f32 %v392, %v535
        %v537 = vpop.f32.mrf.mxu0
        %538 = vmatprep.mubr.f32.mxu0 0.0
        %539 = vmatmul.mubr.f32.gmra.mxu0 %v346
        %v540 = vpop.f32.mrf.mxu0
        %v541 = vadd.f32 %v397, %v540
        %v542 = vpop.f32.mrf.mxu0
        %543 = vmatprep.mubr.f32.mxu0 0.0
        %544 = vmatmul.mubr.f32.gmra.mxu0 %v347
        %v545 = vpop.f32.mrf.mxu0
        %v546 = vadd.f32 %v402, %v545
        %v547 = vpop.f32.mrf.mxu0
        %548 = vmatprep.mubr.f32.mxu0 0.0
        %549 = vmatmul.mubr.f32.gmra.mxu0 %v348
        %v550 = vpop.f32.mrf.mxu0
        %v551 = vadd.f32 %v407, %v550
        %v552 = vpop.f32.mrf.mxu0
        %553 = vmatprep.mubr.f32.mxu0 0.0
        %554 = vmatmul.mubr.f32.gmra.mxu0 %v349
        %v555 = vpop.f32.mrf.mxu0
        %v556 = vadd.f32 %v412, %v555
        %v557 = vpop.f32.mrf.mxu0
        %558 = vmatprep.mubr.f32.mxu0 0.0
        %559 = vmatmul.mubr.f32.gmra.mxu0 %v350
        %v560 = vpop.f32.mrf.mxu0
        %v561 = vadd.f32 %v417, %v560
        %v562 = vpop.f32.mrf.mxu0
        %563 = vmatprep.mubr.f32.mxu0 0.0
        %564 = vmatmul.mubr.f32.gmra.mxu0 %v351
        %v565 = vpop.f32.mrf.mxu0
        %v566 = vadd.f32 %v422, %v565
        %v567 = vpop.f32.mrf.mxu0
        %568 = vmatprep.mubr.f32.mxu0 0.0
        %569 = vmatmul.mubr.f32.gmra.mxu0 %v352
        %v570 = vpop.f32.mrf.mxu0
        %v571 = vadd.f32 %v427, %v570
        %v572 = vpop.f32.mrf.mxu0
        %573 = vmatprep.mubr.f32.mxu0 0.0
        %574 = vmatmul.mubr.f32.gmra.mxu0 %v353
        %v575 = vpop.f32.mrf.mxu0
        %v576 = vadd.f32 %v432, %v575
        %v577 = vpop.f32.mrf.mxu0
        %578 = vmatprep.mubr.f32.mxu0 0.0
        %579 = vmatmul.mubr.f32.gmra.mxu0 %v354
        %v580 = vpop.f32.mrf.mxu0
        %v581 = vadd.f32 %v437, %v580
        %v582 = vpop.f32.mrf.mxu0
        %583 = vmatprep.mubr.f32.mxu0 0.0
        %584 = vmatmul.mubr.f32.gmra.mxu0 %v355
        %v585 = vpop.f32.mrf.mxu0
        %v586 = vadd.f32 %v442, %v585
        %v587 = vpop.f32.mrf.mxu0
        %588 = vmatprep.mubr.f32.mxu0 0.0
        %589 = vmatmul.mubr.f32.gmra.mxu0 %v356
        %v590 = vpop.f32.mrf.mxu0
        %v591 = vadd.f32 %v447, %v590
        %v592 = vpop.f32.mrf.mxu0
        %593 = vmatprep.mubr.f32.mxu0 0.0
        %594 = vmatmul.mubr.f32.gmra.mxu0 %v357
        %v595 = vpop.f32.mrf.mxu0
        %v596 = vadd.f32 %v452, %v595
        %v597 = vpop.f32.mrf.mxu0
        %598 = vdwg.mxu0
        %v599 = vmax.f32 %v521, 0.0
        %v600 = vmax.f32 %v526, 0.0
        %v601 = vmax.f32 %v531, 0.0
        %v602 = vmax.f32 %v536, 0.0
        %v603 = vmax.f32 %v541, 0.0
        %v604 = vmax.f32 %v546, 0.0
        %v605 = vmax.f32 %v551, 0.0
        %v606 = vmax.f32 %v556, 0.0
        %v607 = vmax.f32 %v561, 0.0
        %v608 = vmax.f32 %v566, 0.0
        %v609 = vmax.f32 %v571, 0.0
        %v610 = vmax.f32 %v576, 0.0
        %v611 = vmax.f32 %v581, 0.0
        %v612 = vmax.f32 %v586, 0.0
        %v613 = vmax.f32 %v591, 0.0
        %v614 = vmax.f32 %v596, 0.0
        %v615 = vld [vmem:[%s314] sm:$0xff]
        %v616 = vld [vmem:[%s314 + $0x8] sm:$0xff]
        %v617 = vld [vmem:[%s314 + $0x10] sm:$0xff]
        %v618 = vld [vmem:[%s314 + $0x18] sm:$0xff]
        %v619 = vld [vmem:[%s314 + $0x20] sm:$0xff]
        %v620 = vld [vmem:[%s314 + $0x28] sm:$0xff]
        %v621 = vld [vmem:[%s314 + $0x30] sm:$0xff]
        %v622 = vld [vmem:[%s314 + $0x38] sm:$0xff]
        %v623 = vld [vmem:[%s314 + $0x40] sm:$0xff]
        %v624 = vld [vmem:[%s314 + $0x48] sm:$0xff]
        %v625 = vld [vmem:[%s314 + $0x50] sm:$0xff]
        %v626 = vld [vmem:[%s314 + $0x58] sm:$0xff]
        %v627 = vld [vmem:[%s314 + $0x60] sm:$0xff]
        %v628 = vld [vmem:[%s314 + $0x68] sm:$0xff]
        %v629 = vld [vmem:[%s314 + $0x70] sm:$0xff]
        %v630 = vld [vmem:[%s314 + $0x78] sm:$0xff]
        %631 = vset.pattern.permute.xlu0 1
        %632 = vperm.xlu0 %631, %v326
        %v633 = vpop.permute.xlu0 %632
        %635 = vset.pattern.permute.xlu0 1
        %636 = vperm.xlu0 %635, %v327
        %v637 = vpop.permute.xlu0 %636
        %639 = vset.pattern.permute.xlu0 1
        %640 = vperm.xlu0 %639, %v328
        %v641 = vpop.permute.xlu0 %640
        %643 = vset.pattern.permute.xlu0 1
        %644 = vperm.xlu0 %643, %v329
        %v645 = vpop.permute.xlu0 %644
        %647 = vset.pattern.permute.xlu0 1
        %648 = vperm.xlu0 %647, %v330
        %v649 = vpop.permute.xlu0 %648
        %651 = vset.pattern.permute.xlu0 1
        %652 = vperm.xlu0 %651, %v331
        %v653 = vpop.permute.xlu0 %652
        %655 = vset.pattern.permute.xlu0 1
        %656 = vperm.xlu0 %655, %v332
        %v657 = vpop.permute.xlu0 %656
        %659 = vset.pattern.permute.xlu0 1
        %660 = vperm.xlu0 %659, %v333
        %v661 = vpop.permute.xlu0 %660
        %663 = vset.pattern.permute.xlu0 1
        %664 = vperm.xlu0 %663, %v334
        %v665 = vpop.permute.xlu0 %664
        %667 = vset.pattern.permute.xlu0 1
        %668 = vperm.xlu0 %667, %v335
        %v669 = vpop.permute.xlu0 %668
        %671 = vset.pattern.permute.xlu0 1
        %672 = vperm.xlu0 %671, %v336
        %v673 = vpop.permute.xlu0 %672
        %675 = vset.pattern.permute.xlu0 1
        %676 = vperm.xlu0 %675, %v337
        %v677 = vpop.permute.xlu0 %676
        %679 = vset.pattern.permute.xlu0 1
        %680 = vperm.xlu0 %679, %v338
        %v681 = vpop.permute.xlu0 %680
        %683 = vset.pattern.permute.xlu0 1
        %684 = vperm.xlu0 %683, %v339
        %v685 = vpop.permute.xlu0 %684
        %687 = vset.pattern.permute.xlu0 1
        %688 = vperm.xlu0 %687, %v340
        %v689 = vpop.permute.xlu0 %688
        %691 = vset.pattern.permute.xlu0 1
        %692 = vperm.xlu0 %691, %v341
        %v693 = vpop.permute.xlu0 %692
        %695 = vmatprep.subr.mxu0 0.0
        %696 = vmatpush1.msra.mxu0 %v614
        %697 = vmatprep.subr.mxu0 0.0
        %698 = vmatpush1.msra.mxu0 %v613
        %699 = vmatprep.subr.mxu0 0.0
        %700 = vmatpush1.msra.mxu0 %v612
        %701 = vmatprep.subr.mxu0 0.0
        %702 = vmatpush1.msra.mxu0 %v611
        %703 = vmatprep.subr.mxu0 0.0
        %704 = vmatpush1.msra.mxu0 %v610
        %705 = vmatprep.subr.mxu0 0.0
        %706 = vmatpush1.msra.mxu0 %v609
        %707 = vmatprep.subr.mxu0 0.0
        %708 = vmatpush1.msra.mxu0 %v608
        %709 = vmatprep.subr.mxu0 0.0
        %710 = vmatpush1.msra.mxu0 %v607
        %711 = vmatprep.subr.mxu0 0.0
        %712 = vmatpush1.msra.mxu0 %v606
        %713 = vmatprep.subr.mxu0 0.0
        %714 = vmatpush1.msra.mxu0 %v605
        %715 = vmatprep.subr.mxu0 0.0
        %716 = vmatpush1.msra.mxu0 %v604
        %717 = vmatprep.subr.mxu0 0.0
        %718 = vmatpush1.msra.mxu0 %v603
        %719 = vmatprep.subr.mxu0 0.0
        %720 = vmatpush1.msra.mxu0 %v602
        %721 = vmatprep.subr.mxu0 0.0
        %722 = vmatpush1.msra.mxu0 %v601
        %723 = vmatprep.subr.mxu0 0.0
        %724 = vmatpush1.msra.mxu0 %v600
        %725 = vmatprep.subr.mxu0 0.0
        %726 = vmatpush1.msra.mxu0 %v599
        %727 = vmatprep.subr.mxu0 0.0
        %728 = vmatpush2.msra.mxu0 0.0
        %729 = vmatprep.subr.mxu0 0.0
        %730 = vmatpush2.msra.mxu0 0.0
        %731 = vmatprep.subr.mxu0 0.0
        %732 = vmatpush2.msra.mxu0 0.0
        %733 = vmatprep.subr.mxu0 0.0
        %734 = vmatpush2.msra.mxu0 0.0
        %735 = vmatprep.subr.mxu0 0.0
        %736 = vmatpush2.msra.mxu0 0.0
        %737 = vmatprep.subr.mxu0 0.0
        %738 = vmatpush2.msra.mxu0 0.0
        %739 = vmatprep.subr.mxu0 0.0
        %740 = vmatpush2.msra.mxu0 0.0
        %741 = vmatprep.subr.mxu0 0.0
        %742 = vmatpush2.msra.mxu0 0.0
        %743 = vmatprep.subr.mxu0 0.0
        %744 = vmatpush2.msra.mxu0 0.0
        %745 = vmatprep.subr.mxu0 0.0
        %746 = vmatpush2.msra.mxu0 0.0
        %747 = vmatprep.subr.mxu0 0.0
        %748 = vmatpush2.msra.mxu0 0.0
        %749 = vmatprep.subr.mxu0 0.0
        %750 = vmatpush2.msra.mxu0 0.0
        %751 = vmatprep.subr.mxu0 0.0
        %752 = vmatpush2.msra.mxu0 0.0
        %753 = vmatprep.subr.mxu0 0.0
        %754 = vmatpush2.msra.mxu0 0.0
        %755 = vmatprep.subr.mxu0 0.0
        %756 = vmatpush2.msra.mxu0 0.0
        %757 = vmatprep.subr.mxu0 0.0
        %758 = vmatpush2.msra.mxu0 0.0
        %759 = vmatprep.mubr.f32.mxu0 0.0
        %760 = vmatmul.mubr.f32.gmra.mxu0 %v615
        %v761 = vpop.f32.mrf.mxu0
        %v762 = vadd.f32 %v633, %v761
        %v763 = vpop.f32.mrf.mxu0
        %764 = vmatprep.mubr.f32.mxu0 0.0
        %765 = vmatmul.mubr.f32.gmra.mxu0 %v616
        %v766 = vpop.f32.mrf.mxu0
        %v767 = vadd.f32 %v637, %v766
        %v768 = vpop.f32.mrf.mxu0
        %769 = vmatprep.mubr.f32.mxu0 0.0
        %770 = vmatmul.mubr.f32.gmra.mxu0 %v617
        %v771 = vpop.f32.mrf.mxu0
        %v772 = vadd.f32 %v641, %v771
        %v773 = vpop.f32.mrf.mxu0
        %774 = vmatprep.mubr.f32.mxu0 0.0
        %775 = vmatmul.mubr.f32.gmra.mxu0 %v618
        %v776 = vpop.f32.mrf.mxu0
        %v777 = vadd.f32 %v645, %v776
        %v778 = vpop.f32.mrf.mxu0
        %779 = vmatprep.mubr.f32.mxu0 0.0
        %780 = vmatmul.mubr.f32.gmra.mxu0 %v619
        %v781 = vpop.f32.mrf.mxu0
        %v782 = vadd.f32 %v649, %v781
        %v783 = vpop.f32.mrf.mxu0
        %784 = vmatprep.mubr.f32.mxu0 0.0
        %785 = vmatmul.mubr.f32.gmra.mxu0 %v620
        %v786 = vpop.f32.mrf.mxu0
        %v787 = vadd.f32 %v653, %v786
        %v788 = vpop.f32.mrf.mxu0
        %789 = vmatprep.mubr.f32.mxu0 0.0
        %790 = vmatmul.mubr.f32.gmra.mxu0 %v621
        %v791 = vpop.f32.mrf.mxu0
        %v792 = vadd.f32 %v657, %v791
        %v793 = vpop.f32.mrf.mxu0
        %794 = vmatprep.mubr.f32.mxu0 0.0
        %795 = vmatmul.mubr.f32.gmra.mxu0 %v622
        %v796 = vpop.f32.mrf.mxu0
        %v797 = vadd.f32 %v661, %v796
        %v798 = vpop.f32.mrf.mxu0
        %799 = vmatprep.mubr.f32.mxu0 0.0
        %800 = vmatmul.mubr.f32.gmra.mxu0 %v623
        %v801 = vpop.f32.mrf.mxu0
        %v802 = vadd.f32 %v665, %v801
        %v803 = vpop.f32.mrf.mxu0
        %804 = vmatprep.mubr.f32.mxu0 0.0
        %805 = vmatmul.mubr.f32.gmra.mxu0 %v624
        %v806 = vpop.f32.mrf.mxu0
        %v807 = vadd.f32 %v669, %v806
        %v808 = vpop.f32.mrf.mxu0
        %809 = vmatprep.mubr.f32.mxu0 0.0
        %810 = vmatmul.mubr.f32.gmra.mxu0 %v625
        %v811 = vpop.f32.mrf.mxu0
        %v812 = vadd.f32 %v673, %v811
        %v813 = vpop.f32.mrf.mxu0
        %814 = vmatprep.mubr.f32.mxu0 0.0
        %815 = vmatmul.mubr.f32.gmra.mxu0 %v626
        %v816 = vpop.f32.mrf.mxu0
        %v817 = vadd.f32 %v677, %v816
        %v818 = vpop.f32.mrf.mxu0
        %819 = vmatprep.mubr.f32.mxu0 0.0
        %820 = vmatmul.mubr.f32.gmra.mxu0 %v627
        %v821 = vpop.f32.mrf.mxu0
        %v822 = vadd.f32 %v681, %v821
        %v823 = vpop.f32.mrf.mxu0
        %824 = vmatprep.mubr.f32.mxu0 0.0
        %825 = vmatmul.mubr.f32.gmra.mxu0 %v628
        %v826 = vpop.f32.mrf.mxu0
        %v827 = vadd.f32 %v685, %v826
        %v828 = vpop.f32.mrf.mxu0
        %829 = vmatprep.mubr.f32.mxu0 0.0
        %830 = vmatmul.mubr.f32.gmra.mxu0 %v629
        %v831 = vpop.f32.mrf.mxu0
        %v832 = vadd.f32 %v689, %v831
        %v833 = vpop.f32.mrf.mxu0
        %834 = vmatprep.mubr.f32.mxu0 0.0
        %835 = vmatmul.mubr.f32.gmra.mxu0 %v630
        %v836 = vpop.f32.mrf.mxu0
        %v837 = vadd.f32 %v693, %v836
        %v838 = vpop.f32.mrf.mxu0
        %839 = vdwg.mxu0
        %v840 = vmax.f32 %v762, 0.0
        %v841 = vmax.f32 %v767, 0.0
        %v842 = vmax.f32 %v772, 0.0
        %v843 = vmax.f32 %v777, 0.0
        %v844 = vmax.f32 %v782, 0.0
        %v845 = vmax.f32 %v787, 0.0
        %v846 = vmax.f32 %v792, 0.0
        %v847 = vmax.f32 %v797, 0.0
        %v848 = vmax.f32 %v802, 0.0
        %v849 = vmax.f32 %v807, 0.0
        %v850 = vmax.f32 %v812, 0.0
        %v851 = vmax.f32 %v817, 0.0
        %v852 = vmax.f32 %v822, 0.0
        %v853 = vmax.f32 %v827, 0.0
        %v854 = vmax.f32 %v832, 0.0
        %v855 = vmax.f32 %v837, 0.0
        %856 = vset.pattern.permute.xlu0 2
        %857 = vperm.xlu0 %856, %v326
        %v858 = vpop.permute.xlu0 %857
        %860 = vset.pattern.permute.xlu0 2
        %861 = vperm.xlu0 %860, %v327
        %v862 = vpop.permute.xlu0 %861
        %864 = vset.pattern.permute.xlu0 2
        %865 = vperm.xlu0 %864, %v328
        %v866 = vpop.permute.xlu0 %865
        %868 = vset.pattern.permute.xlu0 2
        %869 = vperm.xlu0 %868, %v329
        %v870 = vpop.permute.xlu0 %869
        %872 = vset.pattern.permute.xlu0 2
        %873 = vperm.xlu0 %872, %v330
        %v874 = vpop.permute.xlu0 %873
        %876 = vset.pattern.permute.xlu0 2
        %877 = vperm.xlu0 %876, %v331
        %v878 = vpop.permute.xlu0 %877
        %880 = vset.pattern.permute.xlu0 2
        %881 = vperm.xlu0 %880, %v332
        %v882 = vpop.permute.xlu0 %881
        %884 = vset.pattern.permute.xlu0 2
        %885 = vperm.xlu0 %884, %v333
        %v886 = vpop.permute.xlu0 %885
        %888 = vset.pattern.permute.xlu0 2
        %889 = vperm.xlu0 %888, %v334
        %v890 = vpop.permute.xlu0 %889
        %892 = vset.pattern.permute.xlu0 2
        %893 = vperm.xlu0 %892, %v335
        %v894 = vpop.permute.xlu0 %893
        %896 = vset.pattern.permute.xlu0 2
        %897 = vperm.xlu0 %896, %v336
        %v898 = vpop.permute.xlu0 %897
        %900 = vset.pattern.permute.xlu0 2
        %901 = vperm.xlu0 %900, %v337
        %v902 = vpop.permute.xlu0 %901
        %904 = vset.pattern.permute.xlu0 2
        %905 = vperm.xlu0 %904, %v338
        %v906 = vpop.permute.xlu0 %905
        %908 = vset.pattern.permute.xlu0 2
        %909 = vperm.xlu0 %908, %v339
        %v910 = vpop.permute.xlu0 %909
        %912 = vset.pattern.permute.xlu0 2
        %913 = vperm.xlu0 %912, %v340
        %v914 = vpop.permute.xlu0 %913
        %916 = vset.pattern.permute.xlu0 2
        %917 = vperm.xlu0 %916, %v341
        %v918 = vpop.permute.xlu0 %917
        %v920 = vmul.f32 %v840, %v858
        %v921 = vmul.f32 %v841, %v862
        %v922 = vmul.f32 %v842, %v866
        %v923 = vmul.f32 %v843, %v870
        %v924 = vmul.f32 %v844, %v874
        %v925 = vmul.f32 %v845, %v878
        %v926 = vmul.f32 %v846, %v882
        %v927 = vmul.f32 %v847, %v886
        %v928 = vmul.f32 %v848, %v890
        %v929 = vmul.f32 %v849, %v894
        %v930 = vmul.f32 %v850, %v898
        %v931 = vmul.f32 %v851, %v902
        %v932 = vmul.f32 %v852, %v906
        %v933 = vmul.f32 %v853, %v910
        %v934 = vmul.f32 %v854, %v914
        %v935 = vmul.f32 %v855, %v918
        %v936 = vadd.f32 %v920, %v921
        %v937 = vadd.f32 %v936, %v922
        %v938 = vadd.f32 %v937, %v923
        %v939 = vadd.f32 %v938, %v924
        %v940 = vadd.f32 %v939, %v925
        %v941 = vadd.f32 %v940, %v926
        %v942 = vadd.f32 %v941, %v927
        %v943 = vadd.f32 %v942, %v928
        %v944 = vadd.f32 %v943, %v929
        %v945 = vadd.f32 %v944, %v930
        %v946 = vadd.f32 %v945, %v931
        %v947 = vadd.f32 %v946, %v932
        %v948 = vadd.f32 %v947, %v933
        %v949 = vadd.f32 %v948, %v934
        %v950 = vadd.f32 %v949, %v935
        %v951 = vrot.slane %v950, 4
        %v952 = vadd.f32 %v950, %v951
        %v953 = vrot.slane %v952, 2
        %v954 = vadd.f32 %v952, %v953
        %v955 = vrot.slane %v954, 1
        %v956 = vadd.f32 %v954, %v955
        %s957 = sld [smem:[#allocation2 + %s21]]
        %v958 = vstv %s957
        %v959 = vadd.f32 %v956, %v958
        %960 = vst [vmem:[%s325] sm:$0x1] %v959
        %p961 = scmp.lt.s32.totalorder %s21, 1
        %s962 = scalar_select %p961, %s21, 1
        %p963 = scmp.lt.s32.totalorder %s22, 0
        %s964 = scalar_select %p963, %s22, 0
        %s965 = sadd.s32 %s964, %s962
        %s966 = scalar_lea.vmem %s5, %s965
        // Predicated region
        $region45: #{_forward_group_jit.1} parent=39 // pred_check
          %p967 = pneg %p176
        $region46: #{_forward_group_jit.1} parent=39 // pred_check_branch
          %969 = sbr.rel (%p967) target = $region48
        $region47: #{_forward_group_jit.1} parent=39 // pred_region
          _
        $region48: #{_forward_group_jit.1} parent=39 // pred_fallthru
          _
      $region40: #{_forward_group_jit.1} parent=5 // pred_fallthru
        _
      %p970 = scmp.le.s32.totalorder 2, %s12
      // Predicated region
      $region49: #{_forward_group_jit.1} parent=5 // pred_check
        %p971 = pneg %p970
      $region50: #{_forward_group_jit.1} parent=5 // pred_check_branch
        %973 = sbr.rel (%p971) target = $region52
      $region51: #{_forward_group_jit.1} parent=5 // pred_region
        %s974 = ssub.s32 %s12, 2
        // Predicated region
        $region53: #{_forward_group_jit.1} parent=51 // pred_check
          %p975 = pneg %p182
        $region54: #{_forward_group_jit.1} parent=51 // pred_check_branch
          %977 = sbr.rel (%p975) target = $region56
        $region55: #{_forward_group_jit.1} parent=51 // pred_region
          %p978 = scmp.lt.s32.totalorder %s23, 1
          %s979 = scalar_select %p978, %s23, 1
          %p980 = scmp.lt.s32.totalorder %s24, 0
          %s981 = scalar_select %p980, %s24, 0
          %s982 = sadd.s32 %s981, %s979
          %s983 = scalar_lea.vmem %s5, %s982
        $region56: #{_forward_group_jit.1} parent=51 // pred_fallthru
          _
      $region52: #{_forward_group_jit.1} parent=5 // pred_fallthru
        _
    $region6: #{_forward_group_jit.1} parent=1 // loop_footer
      %s16 = sadd.s32 1, %s12
    $region7: #{_forward_group_jit.1} parent=1 // loop_footer_branch
      %11 = sbr.rel target = $region3
    $region8: #{_forward_group_jit.1} parent=1 // loop_exit
      _
    %984 = vsyncpa [#allocation3], 1
    %s985 = scalar_lea.sflag [#allocation3], 1
    %986 = vsyncpa %s985, 1

</llo_original>
